<compile_context>
chip_gen: v6e
topology: v6e:2x2x1
jax: 0.10.0
libtpu: 0.0.40
codegen_flags: <defaults>
</compile_context>

<pallas_src>
import functools

import jax
import jax.numpy as jnp
from jax.experimental import pallas as pl
from jax.experimental.pallas import tpu as pltpu

LANE = 128
_MAX_ROW_TILE = 2048                  # per-generation knob (v5e/v6e/v7x all fine <=1024ch)
_TILE_BYTES_BUDGET = 4 * 1024 * 1024  # target bytes per matmul activation block
_MAX_BLOCK_BYTES = 8 * 1024 * 1024    # max bytes for the norm+max input block
_VMEM_LIMIT = 48 * 1024 * 1024        # explicit scoped-VMEM limit (v5e default is 16 MiB)


def _round_up(x, m):
    return ((x + m - 1) // m) * m


def _largest_divisor(n, cap, multiple):
    """Largest d <= cap with d | n and (d % multiple == 0 or d == n); None if none."""
    for d in range(min(n, cap), 0, -1):
        if n % d == 0 and (d % multiple == 0 or d == n):
            return d
    return None


def _pick_tiling(bs, K, c_max_p):
    """Returns (tile_bs, bsp, tile_rows_mm, k_chunk)."""
    # bs-row tile for the final max kernel: multiple of 8, ~_MAX_ROW_TILE/K rows,
    # never (much) larger than bs itself.
    tb = min(max(8, (_MAX_ROW_TILE // max(K, 1)) // 8 * 8), _round_up(bs, 8))
    bsp = _round_up(bs, tb)
    # K-chunk for the final max kernel so its input block stays <= _MAX_BLOCK_BYTES.
    max_kc = max(1, _MAX_BLOCK_BYTES // (tb * c_max_p * 2))
    if K <= max_kc:
        kc = K
    else:
        kc = _largest_divisor(K, (max_kc // 8) * 8, 8)
        if kc is None:
            kc = K  # TODO(synk): awkward K; oversize block rather than mis-tile.
    # Flat row tile for the per-layer matmul kernels: tb * (divisor of K), capped by
    # both _MAX_ROW_TILE and a per-block byte budget so wide layers still fit VMEM.
    row_cap = min(_MAX_ROW_TILE,
                  max(8, (_TILE_BYTES_BUDGET // (2 * c_max_p)) // 8 * 8))
    kq = _largest_divisor(K, max(1, row_cap // tb), 1) or 1
    return tb, bsp, tb * kq, kc


# ----------------------------------------------------------------------------
# Kernel 1: (optional pre-normalize + ReLU of previous layer) -> bf16 MXU matmul
#           (f32 acc, conv bias dropped: it cancels under training-mode BN) ->
#           per-tile partial BatchNorm statistics of THIS layer's pre-BN output.
# Grid: 1-D over flat (B*S*K) row tiles, "parallel".
# ----------------------------------------------------------------------------
def _mlp_layer_kernel(x_ref, ss_ref, w_ref, y_ref, ps_ref, *,
                      prenorm, mask_rows, rows_valid, tile_rows):
    h = x_ref[...]                                            # [T, Cin] bf16
    if prenorm:
        # Previous layer's BatchNorm folded into a per-channel scale/shift (+ReLU).
        hf = h.astype(jnp.float32)
        hf = jnp.maximum(hf * ss_ref[0:1, :] + ss_ref[1:2, :], 0.0)
        if mask_rows:
            # Zero rows that are padding of the flat row axis so they never
            # pollute this layer's BatchNorm statistics.  Only emitted when
            # padding actually exists (common shapes: no padding at all).
            row = (jax.lax.broadcasted_iota(jnp.int32, hf.shape, 0)
                   + pl.program_id(0) * tile_rows)
            hf = jnp.where(row < rows_valid, hf, 0.0)
        h = hf.astype(jnp.bfloat16)                           # MXU operands bf16
    # First layer: padded rows are zero in the input slab and the conv bias is
    # dropped, so no masking is needed there.
    y = jnp.dot(h, w_ref[...], preferred_element_type=jnp.float32)   # [T, Cout] f32
    y_ref[...] = y.astype(y_ref.dtype)
    # One-pass partial stats (sum, sum-of-squares); tiny two-level f32 combine
    # happens outside the kernel.
    ps_ref[0] = jnp.concatenate(
        [jnp.sum(y, axis=0, keepdims=True),
         jnp.sum(y * y, axis=0, keepdims=True)], axis=0)      # [2, Cout]


# ----------------------------------------------------------------------------
# Kernel 2: normalize last layer + ReLU, then max over the K (nsample) axis via
# a resident f32 VMEM accumulator (K chunked on the innermost "arbitrary" axis).
# ----------------------------------------------------------------------------
def _norm_max_kernel(y_ref, ss_ref, o_ref, acc_ref):
    kk = pl.program_id(1)
    h = y_ref[...].astype(jnp.float32)                        # [tb, kc, C]
    h = jnp.maximum(h * ss_ref[0:1, :][None] + ss_ref[1:2, :][None], 0.0)
    m = jnp.max(h, axis=1)                                    # [tb, C]

    @pl.when(kk == 0)
    def _():
        acc_ref[...] = m

    @pl.when(kk > 0)
    def _():
        acc_ref[...] = jnp.maximum(acc_ref[...], m)

    @pl.when(kk == pl.num_programs(1) - 1)
    def _():
        o_ref[...] = acc_ref[...].astype(o_ref.dtype)


# ----------------------------------------------------------------------------
# pallas_call wrappers
# ----------------------------------------------------------------------------
def _run_mlp_layer(x, ss, w, *, prenorm, mask_rows, rows_valid, tile_rows):
    rows, c_in = x.shape
    c_out = w.shape[1]
    nrt = rows // tile_rows
    kernel = functools.partial(_mlp_layer_kernel, prenorm=prenorm,
                               mask_rows=mask_rows, rows_valid=rows_valid,
                               tile_rows=tile_rows)
    y, ps = pl.pallas_call(
        kernel,
        grid=(nrt,),
        in_specs=[
            pl.BlockSpec((tile_rows, c_in), lambda i: (i, 0)),
            pl.BlockSpec((2, c_in), lambda i: (0, 0)),          # scale/shift
            pl.BlockSpec((c_in, c_out), lambda i: (0, 0)),      # weights
        ],
        out_specs=[
            pl.BlockSpec((tile_rows, c_out), lambda i: (i, 0)),
            pl.BlockSpec((1, 2, c_out), lambda i: (i, 0, 0)),   # per-tile stats
        ],
        out_shape=[
            jax.ShapeDtypeStruct((rows, c_out), jnp.bfloat16),
            jax.ShapeDtypeStruct((nrt, 2, c_out), jnp.float32),
        ],
        compiler_params=pltpu.CompilerParams(
            dimension_semantics=("parallel",),
            vmem_limit_bytes=_VMEM_LIMIT),
    )(x, ss, w)
    return y, ps


def _run_norm_max(y, ss, *, tile_bs, k_chunk):
    bsp, K, c = y.shape
    return pl.pallas_call(
        _norm_max_kernel,
        grid=(bsp // tile_bs, K // k_chunk),
        in_specs=[
            pl.BlockSpec((tile_bs, k_chunk, c), lambda i, kk: (i, kk, 0)),
            pl.BlockSpec((2, c), lambda i, kk: (0, 0)),
        ],
        out_specs=pl.BlockSpec((tile_bs, c), lambda i, kk: (i, 0)),
        out_shape=jax.ShapeDtypeStruct((bsp, c), jnp.bfloat16),
        scratch_shapes=[pltpu.VMEM((tile_bs, c), jnp.float32)],
        compiler_params=pltpu.CompilerParams(
            dimension_semantics=("parallel", "arbitrary"),
            vmem_limit_bytes=_VMEM_LIMIT),
    )(y, ss)


# ----------------------------------------------------------------------------
# MLP chain (conv1x1 + BN(train) + ReLU)* + max over nsample, tiled.
# grouped: [B, S, K, C0] (bf16 recommended).  Returns [B, S, C_last] f32.
# ----------------------------------------------------------------------------
def sa_mlp_pallas(grouped, params, *, eps=1e-5):
    B, S, K, C0 = grouped.shape
    bs = B * S
    c_max_p = max(_round_up(w.shape[1], LANE) for (w, _, _, _) in params)
    tile_bs, bsp, tile_rows, k_chunk = _pick_tiling(bs, K, c_max_p)

    x = grouped.astype(jnp.bfloat16).reshape(bs, K, C0)
    if bsp != bs:
        x = jnp.pad(x, ((0, bsp - bs), (0, 0), (0, 0)))   # zero rows (masked later)
    x = x.reshape(bsp * K, C0)                            # flat rows (free reshape)
    rows_valid = bs * K
    mask_rows = bsp != bs

    ss = jnp.zeros((2, C0), jnp.float32)                  # unused by the first layer
    prenorm = False
    c_in, c_in_p = C0, C0
    for (w, _bias, gamma, beta) in params:                # conv bias dropped: cancels in BN
        c_out = w.shape[1]
        c_out_p = _round_up(c_out, LANE)                  # lane-dense stores/loads
        w_p = jnp.zeros((c_in_p, c_out_p), jnp.float32).at[:c_in, :c_out].set(w)
        g_p = jnp.zeros((c_out_p,), jnp.float32).at[:c_out].set(gamma)
        b_p = jnp.zeros((c_out_p,), jnp.float32).at[:c_out].set(beta)

        y, ps = _run_mlp_layer(x, ss, w_p.astype(jnp.bfloat16),
                               prenorm=prenorm, mask_rows=mask_rows,
                               rows_valid=rows_valid, tile_rows=tile_rows)

        # Tiny per-layer glue: two-level combine of per-tile partial sums, then
        # fold mean/var/gamma/beta into one per-channel scale/shift.
        # NOTE: stats come from the f32 matmul output while the scale/shift is
        # applied next layer to the bf16-rounded y (tiny, deliberate mismatch);
        # the one-pass E[x^2]-mean^2 variance is clamped at 0.
        s = jnp.sum(ps, axis=0)                           # [2, c_out_p]
        mean = s[0] / rows_valid
        var = jnp.maximum(s[1] / rows_valid - mean * mean, 0.0)
        inv = jax.lax.rsqrt(var + eps)
        scale = g_p * inv
        shift = b_p - mean * scale
        ss = jnp.stack([scale, shift], axis=0)            # [2, c_out_p] f32

        x = y
        prenorm = True
        c_in, c_in_p = c_out, c_out_p

    y3 = x.reshape(bsp, K, c_in_p)                        # free (contiguous) reshape
    out = _run_norm_max(y3, ss, tile_bs=tile_bs, k_chunk=k_chunk)   # [bsp, c_p] bf16
    return out[:bs, :c_in].astype(jnp.float32).reshape(B, S, c_in)


# ----------------------------------------------------------------------------
# Plain-JAX glue: FPS / ball query / grouping.
# TODO(synk): farthest-point sampling and ball query are data-dependent
#             argmax-loop / top-k gather with no clean Pallas tiling; kept in JAX.
# ----------------------------------------------------------------------------
def square_distance(src, dst):
    dist = -2.0 * jnp.einsum('bnc,bmc->bnm', src, dst)
    dist = dist + jnp.sum(src ** 2, -1)[:, :, None]
    dist = dist + jnp.sum(dst ** 2, -1)[:, None, :]
    return dist


def index_points(points, idx):
    B = points.shape[0]
    bidx = jnp.arange(B).reshape((B,) + (1,) * (idx.ndim - 1))
    return points[bidx, idx]


def farthest_point_sample(xyz, npoint, key):
    B, N, _ = xyz.shape
    farthest = jax.random.randint(key, (B,), 0, N, dtype=jnp.int32)
    distance = jnp.full((B, N), 1e10, dtype=xyz.dtype)
    centroids = jnp.zeros((B, npoint), dtype=jnp.int32)
    bidx = jnp.arange(B)

    def body(i, carry):
        centroids, distance, farthest = carry
        centroids = centroids.at[:, i].set(farthest)
        centroid = xyz[bidx, farthest, :][:, None, :]
        dist = jnp.sum((xyz - centroid) ** 2, -1)
        distance = jnp.minimum(distance, dist)
        farthest = jnp.argmax(distance, -1).astype(jnp.int32)
        return centroids, distance, farthest

    centroids, _, _ = jax.lax.fori_loop(
        0, npoint, body, (centroids, distance, farthest))
    return centroids


def query_ball_point(radius, nsample, xyz, new_xyz):
    # top_k instead of a full sort over N: the nsample smallest indices among the
    # in-ball points (out-of-ball points pushed to sentinel index N).
    B, N, _ = xyz.shape
    sqrdists = square_distance(new_xyz, xyz)                       # [B,S,N]
    cand = jnp.where(sqrdists > radius ** 2, jnp.int32(N),
                     jnp.arange(N, dtype=jnp.int32))
    group_idx = -jax.lax.top_k(-cand, nsample)[0]                  # ascending order
    group_first = group_idx[:, :, :1]
    return jnp.where(group_idx == N,
                     jnp.broadcast_to(group_first, group_idx.shape), group_idx)


def sample_and_group(npoint, radius, nsample, xyz, points, key):
    """new_xyz [B,S,3] f32; grouped features [B,S,K,3+D] gathered directly in bf16
    (the biggest activation slab is written to HBM exactly once, in bf16)."""
    fps_idx = farthest_point_sample(xyz, npoint, key)              # [B,S]
    new_xyz = index_points(xyz, fps_idx)                           # [B,S,3] f32
    idx = query_ball_point(radius, nsample, xyz, new_xyz)          # [B,S,K]
    xyz_b = xyz.astype(jnp.bfloat16)
    grouped_xyz = (index_points(xyz_b, idx)
                   - new_xyz.astype(jnp.bfloat16)[:, :, None, :])  # [B,S,K,3] bf16
    if points is not None:
        grouped = jnp.concatenate(
            [grouped_xyz, index_points(points.astype(jnp.bfloat16), idx)], axis=-1)
    else:
        grouped = grouped_xyz
    return new_xyz, grouped


def sample_and_group_all(xyz, points):
    B, N, C = xyz.shape
    new_xyz = jnp.zeros((B, 1, C), xyz.dtype)
    feats = xyz if points is None else jnp.concatenate([xyz, points], axis=-1)
    grouped = feats.astype(jnp.bfloat16)[:, None, :, :]            # [B,1,N,C(+D)]
    return new_xyz, grouped


# ----------------------------------------------------------------------------
# Module-equivalent forward: xyz [B,3,N], points [B,D,N] -> ([B,3,S], [B,C',S])
# ----------------------------------------------------------------------------
def pointnet_sa_forward(xyz_b3n, points_bdn, params, *, npoint, radius,
                        nsample, group_all, fps_key, eps=1e-5):
    xyz = jnp.transpose(xyz_b3n, (0, 2, 1))
    points = (jnp.transpose(points_bdn, (0, 2, 1))
              if points_bdn is not None else None)
    if group_all:
        new_xyz, grouped = sample_and_group_all(xyz, points)
    else:
        new_xyz, grouped = sample_and_group(
            npoint, radius, nsample, xyz, points, fps_key)
    feat = sa_mlp_pallas(grouped, params, eps=eps)                 # [B,S,C']
    return jnp.transpose(new_xyz, (0, 2, 1)), jnp.transpose(feat, (0, 2, 1))


# Pure-JAX reference of the MLP stage (conv(+bias)+BN(train)+ReLU, max over K).
# Matmuls cast to bf16 to mirror the kernel's MXU path; grouped is [B,S,K,C].
def _mlp_reference(grouped, params, eps=1e-5):
    h = grouped
    for (w, b, g, be) in params:
        y = jnp.einsum('bskc,cd->bskd',
                       h.astype(jnp.bfloat16), w.astype(jnp.bfloat16),
                       preferred_element_type=jnp.float32) + b
        mean = jnp.mean(y, axis=(0, 1, 2), keepdims=True)
        var = jnp.mean((y - mean) ** 2, axis=(0, 1, 2), keepdims=True)
        h = jnp.maximum((y - mean) / jnp.sqrt(var + eps) * g + be, 0.0)
    return jnp.max(h, axis=2).transpose(0, 2, 1)                   # [B,C',S]


def init_params(key, in_channel, mlp):
    params = []
    c_in = in_channel
    for c_out in mlp:
        key, k1, k2, k3, k4 = jax.random.split(key, 5)
        w = jax.random.normal(k1, (c_in, c_out), jnp.float32) / jnp.sqrt(
            jnp.float32(c_in))
        b = 0.1 * jax.random.normal(k2, (c_out,), jnp.float32)
        g = 1.0 + 0.1 * jax.random.normal(k3, (c_out,), jnp.float32)
        be = 0.1 * jax.random.normal(k4, (c_out,), jnp.float32)
        params.append((w, b, g, be))
        c_in = c_out
    return params


if __name__ == "__main__":
    # Config: npoint=8, radius=0.4, nsample=8, in_channel=3+5, mlp=[16, 32]
    B, N, D = 2, 32, 5
    npoint, radius, nsample = 8, 0.4, 8
    in_channel, mlp = 3 + D, [16, 32]

    root = jax.random.PRNGKey(0)
    k_xyz, k_pts, k_param, k_fps = jax.random.split(root, 4)
    xyz = jax.random.uniform(k_xyz, (B, 3, N), jnp.float32)        # [B,3,N]
    points = jax.random.normal(k_pts, (B, D, N), jnp.float32)      # [B,D,N]
    params = init_params(k_param, in_channel, mlp)

    new_xyz, new_feat = pointnet_sa_forward(
        xyz, points, params, npoint=npoint, radius=radius,
        nsample=nsample, group_all=False, fps_key=k_fps)
    jax.block_until_ready((new_xyz, new_feat))
    assert new_xyz.shape == (B, 3, npoint)
    assert new_feat.shape == (B, mlp[-1], npoint)

    # Correctness check vs. a pure-JAX reference (bf16 slab / bf16 MXU tolerance).
    xyz_t = jnp.transpose(xyz, (0, 2, 1))
    pts_t = jnp.transpose(points, (0, 2, 1))
    _, grouped = sample_and_group(npoint, radius, nsample, xyz_t, pts_t, k_fps)
    feat_ref = _mlp_reference(grouped, params)
    err = float(jnp.max(jnp.abs(new_feat - feat_ref)))
    assert bool(jnp.allclose(new_feat, feat_ref, atol=2e-2, rtol=2e-2)), err

    # group_all path (also exercises padded-row masking and points=None).
    params2 = init_params(jax.random.PRNGKey(7), 3, [8, 16])
    nxyz2, feat2 = pointnet_sa_forward(
        xyz, None, params2, npoint=1, radius=1.0, nsample=1,
        group_all=True, fps_key=k_fps)
    jax.block_until_ready((nxyz2, feat2))
    _, grouped_all = sample_and_group_all(jnp.transpose(xyz, (0, 2, 1)), None)
    ref2 = _mlp_reference(grouped_all, params2)
    assert feat2.shape == (B, 16, 1) and nxyz2.shape == (B, 3, 1)
    assert bool(jnp.allclose(feat2, ref2, atol=2e-2, rtol=2e-2))

    print("KERNEL_OK")
</pallas_src>

<mosaic_0001>
module attributes {stable_mosaic.version = 11 : i64} {
  func.func @_mlp_layer_kernel(%arg0: i32, %arg1: memref<128x8xbf16, #tpu.memory_space<vmem>>, %arg2: memref<2x8xf32, #tpu.memory_space<vmem>>, %arg3: memref<8x128xbf16, #tpu.memory_space<vmem>>, %arg4: memref<128x128xbf16, #tpu.memory_space<vmem>>, %arg5: memref<1x2x128xf32, #tpu.memory_space<vmem>>) attributes {dimension_semantics = [#tpu.dimension_semantics<parallel>], iteration_bounds = array<i64: 1>, scalar_prefetch = 0 : i64, scratch_operands = 0 : i64, tpu.core_type = #tpu.core_type<tc>, window_params = [{transform_indices = @transform_0, window_bounds = array<i64: 128, 8>}, {pipeline_mode = #tpu.pipeline_mode<synchronous>, transform_indices = @transform_1, window_bounds = array<i64: 2, 8>}, {pipeline_mode = #tpu.pipeline_mode<synchronous>, transform_indices = @transform_2, window_bounds = array<i64: 8, 128>}, {transform_indices = @transform_3, window_bounds = array<i64: 128, 128>}, {transform_indices = @transform_4, window_bounds = array<i64: 1, 2, 128>}]} {
    %c0 = arith.constant 0 : index
    %c0_0 = arith.constant 0 : index
    %0 = vector.load %arg1[%c0, %c0_0] : memref<128x8xbf16, #tpu.memory_space<vmem>>, vector<128x8xbf16>
    %c0_1 = arith.constant 0 : index
    %c0_2 = arith.constant 0 : index
    %1 = vector.load %arg3[%c0_1, %c0_2] : memref<8x128xbf16, #tpu.memory_space<vmem>>, vector<8x128xbf16>
    %cst = arith.constant dense<0.000000e+00> : vector<128x128xf32>
    %2 = tpu.matmul %0, %1, %cst {dimension_numbers = #tpu.dot_dimension_numbers<[1], [0], [0], [1], [0, 0, 1, 1], [], []>} : vector<128x8xbf16>, vector<8x128xbf16>, vector<128x128xf32> -> vector<128x128xf32>
    %3 = arith.truncf %2 : vector<128x128xf32> to vector<128x128xbf16>
    %c0_3 = arith.constant 0 : index
    %c0_4 = arith.constant 0 : index
    %4 = vector.load %arg4[%c0_3, %c0_4] : memref<128x128xbf16, #tpu.memory_space<vmem>>, vector<128x128xbf16>
    tpu.vector_store %arg4[%c0_3, %c0_4], %3 {strides = array<i32>} : memref<128x128xbf16, #tpu.memory_space<vmem>>, vector<128x128xbf16>,
    %cst_5 = arith.constant dense<0.000000e+00> : vector<128xf32>
    %5 = vector.multi_reduction <add>, %2, %cst_5 [0] : vector<128x128xf32> to vector<128xf32>
    %6 = vector.shape_cast %5 : vector<128xf32> to vector<1x128xf32>
    %7 = arith.mulf %2, %2 : vector<128x128xf32>
    %cst_6 = arith.constant dense<0.000000e+00> : vector<128xf32>
    %8 = vector.multi_reduction <add>, %7, %cst_6 [0] : vector<128x128xf32> to vector<128xf32>
    %9 = vector.shape_cast %8 : vector<128xf32> to vector<1x128xf32>
    %10 = tpu.concatenate %6, %9 in 0 : vector<1x128xf32>, vector<1x128xf32> -> vector<2x128xf32>
    %c0_7 = arith.constant 0 : index
    %c0_8 = arith.constant 0 : index
    %c0_9 = arith.constant 0 : index
    %11 = vector.load %arg5[%c0_7, %c0_8, %c0_9] : memref<1x2x128xf32, #tpu.memory_space<vmem>>, vector<1x2x128xf32>
    %12 = vector.shape_cast %11 : vector<1x2x128xf32> to vector<2x128xf32>
    %13 = vector.shape_cast %10 : vector<2x128xf32> to vector<1x2x128xf32>
    tpu.vector_store %arg5[%c0_7, %c0_8, %c0_9], %13 {strides = array<i32>} : memref<1x2x128xf32, #tpu.memory_space<vmem>>, vector<1x2x128xf32>,
    return
  }
  func.func @transform_0(%arg0: i32) -> (i32, i32) {
    %c0_i32 = arith.constant 0 : i32
    %c0_i32_0 = arith.constant 0 : i32
    return %arg0, %c0_i32 : i32, i32
  }
  func.func @transform_1(%arg0: i32) -> (i32, i32) {
    %c0_i32 = arith.constant 0 : i32
    %c0_i32_0 = arith.constant 0 : i32
    %c0_i32_1 = arith.constant 0 : i32
    return %c0_i32, %c0_i32_0 : i32, i32
  }
  func.func @transform_2(%arg0: i32) -> (i32, i32) {
    %c0_i32 = arith.constant 0 : i32
    %c0_i32_0 = arith.constant 0 : i32
    %c0_i32_1 = arith.constant 0 : i32
    return %c0_i32, %c0_i32_0 : i32, i32
  }
  func.func @transform_3(%arg0: i32) -> (i32, i32) {
    %c0_i32 = arith.constant 0 : i32
    %c0_i32_0 = arith.constant 0 : i32
    return %arg0, %c0_i32 : i32, i32
  }
  func.func @transform_4(%arg0: i32) -> (i32, i32, i32) {
    %c0_i32 = arith.constant 0 : i32
    %c0_i32_0 = arith.constant 0 : i32
    %c0_i32_1 = arith.constant 0 : i32
    return %arg0, %c0_i32, %c0_i32_0 : i32, i32, i32
  }
}

</mosaic_0001>

<llo_original>
// kernel: tpu_custom_call.1
$region0: #{tpu_custom_call.1}
  #allocation0 [shape = 'u32[]', space=smem, size = 0x4, offset = 0x4, fixed_abs, tag = 'smem constant byte address 0x4 - core index']
  #allocation1 [shape = 'u32[144,128]{1,0:T(1,128)}', space=vmem, size = 0x12000, scoped, tag = 'internal scratch']
  %s0 = inlined_call_operand.vmem [shape: bf16[128,8], index: 0, kind: input, shape index: {}]
  %s1 = inlined_call_operand.vmem [shape: f32[2,8], index: 1, kind: input, shape index: {}]
  %s2 = inlined_call_operand.vmem [shape: bf16[8,128], index: 2, kind: input, shape index: {}]
  %s3 = inlined_call_operand.hbm [shape: bf16[128,128], index: 3, kind: output, shape index: {0}]
  %s4 = inlined_call_operand.hbm [shape: f32[1,2,128], index: 4, kind: output, shape index: {1}]
  %5 = xla_tuple %s3, %s4
  %s6 = sld [smem:[#allocation0]]
  $region30: #{tpu_custom_call.1} parent=0
    _
  %s8 = ssub.s32 1, %s6
  %s9 = scalar_select 0, %s8, %s6
  $region1: #{tpu_custom_call.1} parent=0
    #allocation2 [shape = 'u8[32768]{0}', space=vmem, size = 0x8000, scoped, tag = 'output window, operand 0, single buffered']
    #allocation3 [shape = 's32[1]{0}', space=sflag, size = 0x4, scoped, tag = 'scoped memory for tpu_custom_call.1']
    #allocation4 [shape = 'u8[1024]{0}', space=vmem, size = 0x400, scoped, tag = 'output window, operand 1, single buffered']
    #allocation5 [shape = 's32[1]{0}', space=sflag, size = 0x4, scoped, tag = 'scoped memory for tpu_custom_call.1']
    %10 = vsyncpa [#allocation3], 0
    %11 = vsyncpa [#allocation5], 0
    // Predicated region
    $region2: #{tpu_custom_call.1} parent=1 // pred_check
      _
    $region3: #{tpu_custom_call.1} parent=1 // pred_check_branch
      %13 = sbr.rel (0) target = $region5
    $region4: #{tpu_custom_call.1} parent=1 // pred_region
      _
    $region5: #{tpu_custom_call.1} parent=1 // pred_fallthru
      _
    // Predicated region
    $region6: #{tpu_custom_call.1} parent=1 // pred_check
      _
    $region7: #{tpu_custom_call.1} parent=1 // pred_check_branch
      %15 = sbr.rel (0) target = $region9
    $region8: #{tpu_custom_call.1} parent=1 // pred_region
      _
    $region9: #{tpu_custom_call.1} parent=1 // pred_fallthru
      _
    // Predicated region
    $region10: #{tpu_custom_call.1} parent=1 // pred_check
      _
    $region11: #{tpu_custom_call.1} parent=1 // pred_check_branch
      %17 = sbr.rel (0) target = $region13
    $region12: #{tpu_custom_call.1} parent=1 // pred_region
      _
    $region13: #{tpu_custom_call.1} parent=1 // pred_fallthru
      _
    %v19 = vld [vmem:[%s0] sm:$0xf]
    %v20 = vld [vmem:[%s0 + $0x4] sm:$0xf]
    %v21 = vld [vmem:[%s0 + $0x8] sm:$0xf]
    %v22 = vld [vmem:[%s0 + $0xc] sm:$0xf]
    %v23 = vld [vmem:[%s0 + $0x10] sm:$0xf]
    %v24 = vld [vmem:[%s0 + $0x14] sm:$0xf]
    %v25 = vld [vmem:[%s0 + $0x18] sm:$0xf]
    %v26 = vld [vmem:[%s0 + $0x1c] sm:$0xf]
    %v27 = vld [vmem:[%s0 + $0x20] sm:$0xf]
    %v28 = vld [vmem:[%s0 + $0x24] sm:$0xf]
    %v29 = vld [vmem:[%s0 + $0x28] sm:$0xf]
    %v30 = vld [vmem:[%s0 + $0x2c] sm:$0xf]
    %v31 = vld [vmem:[%s0 + $0x30] sm:$0xf]
    %v32 = vld [vmem:[%s0 + $0x34] sm:$0xf]
    %v33 = vld [vmem:[%s0 + $0x38] sm:$0xf]
    %v34 = vld [vmem:[%s0 + $0x3c] sm:$0xf]
    %v35 = vld [vmem:[%s2] sm:$0xf]
    %v52 = vunpack.c.l.b16 %v19
    %v53 = vunpack.c.l.b16 %v20
    %v54 = vunpack.c.l.b16 %v21
    %v55 = vunpack.c.l.b16 %v22
    %v56 = vunpack.c.l.b16 %v23
    %v57 = vunpack.c.l.b16 %v24
    %v58 = vunpack.c.l.b16 %v25
    %v59 = vunpack.c.l.b16 %v26
    %v60 = vunpack.c.l.b16 %v27
    %v61 = vunpack.c.l.b16 %v28
    %v62 = vunpack.c.l.b16 %v29
    %v63 = vunpack.c.l.b16 %v30
    %v64 = vunpack.c.l.b16 %v31
    %v65 = vunpack.c.l.b16 %v32
    %v66 = vunpack.c.l.b16 %v33
    %v67 = vunpack.c.l.b16 %v34
    %v68 = vpack.c.b16 %v53, %v52
    %v69 = vpack.c.b16 %v55, %v54
    %v70 = vpack.c.b16 %v57, %v56
    %v71 = vpack.c.b16 %v59, %v58
    %v72 = vpack.c.b16 %v61, %v60
    %v73 = vpack.c.b16 %v63, %v62
    %v74 = vpack.c.b16 %v65, %v64
    %v75 = vpack.c.b16 %v67, %v66
    %vm76 = vcmask 64512
    %v78 = vsel %vm76, %v68, 0
    %v81 = vsel %vm76, %v69, 0
    %v84 = vsel %vm76, %v70, 0
    %v87 = vsel %vm76, %v71, 0
    %v90 = vsel %vm76, %v72, 0
    %v93 = vsel %vm76, %v73, 0
    %v96 = vsel %vm76, %v74, 0
    %v99 = vsel %vm76, %v75, 0
    %vm101 = vcmask 1043456
    %v103 = vsel %vm101, %v35, 0
    %105 = vmatprep.subr.bf16.mxu0 0
    %106 = vmatpush1.bf16.msra.mxu0 0
    %107 = vmatprep.subr.bf16.mxu0 0
    %108 = vmatpush1.bf16.msra.mxu0 0
    %109 = vmatprep.subr.bf16.mxu0 0
    %110 = vmatpush1.bf16.msra.mxu0 0
    %111 = vmatprep.subr.bf16.mxu0 0
    %112 = vmatpush1.bf16.msra.mxu0 0
    %113 = vmatprep.subr.bf16.mxu0 0
    %114 = vmatpush1.bf16.msra.mxu0 0
    %115 = vmatprep.subr.bf16.mxu0 0
    %116 = vmatpush1.bf16.msra.mxu0 0
    %117 = vmatprep.subr.bf16.mxu0 0
    %118 = vmatpush1.bf16.msra.mxu0 0
    %119 = vmatprep.subr.bf16.mxu0 0
    %120 = vmatpush1.bf16.msra.mxu0 %v103
    %121 = vmatprep.subr.bf16.mxu0 0
    %122 = vmatpush2.bf16.msra.mxu0 0
    %123 = vmatprep.subr.bf16.mxu0 0
    %124 = vmatpush2.bf16.msra.mxu0 0
    %125 = vmatprep.subr.bf16.mxu0 0
    %126 = vmatpush2.bf16.msra.mxu0 0
    %127 = vmatprep.subr.bf16.mxu0 0
    %128 = vmatpush2.bf16.msra.mxu0 0
    %129 = vmatprep.subr.bf16.mxu0 0
    %130 = vmatpush2.bf16.msra.mxu0 0
    %131 = vmatprep.subr.bf16.mxu0 0
    %132 = vmatpush2.bf16.msra.mxu0 0
    %133 = vmatprep.subr.bf16.mxu0 0
    %134 = vmatpush2.bf16.msra.mxu0 0
    %135 = vmatprep.subr.bf16.mxu0 0
    %136 = vmatpush2.bf16.msra.mxu0 0
    %137 = vmatprep.mubr.bf16.mxu0 0
    %138 = vmatmul.mubr.bf16.gmra.mxu0 %v78
    %v139 = vpop.f32.mrf.mxu0
    %v140 = vadd.f32 0.0, %v139
    %v141 = vpop.f32.mrf.mxu0
    %v142 = vpop.f32.mrf.mxu0
    %v143 = vadd.f32 0.0, %v142
    %v144 = vpop.f32.mrf.mxu0
    %145 = vmatprep.mubr.bf16.mxu0 0
    %146 = vmatmul.mubr.bf16.gmra.mxu0 %v81
    %v147 = vpop.f32.mrf.mxu0
    %v148 = vadd.f32 0.0, %v147
    %v149 = vpop.f32.mrf.mxu0
    %v150 = vpop.f32.mrf.mxu0
    %v151 = vadd.f32 0.0, %v150
    %v152 = vpop.f32.mrf.mxu0
    %153 = vmatprep.mubr.bf16.mxu0 0
    %154 = vmatmul.mubr.bf16.gmra.mxu0 %v84
    %v155 = vpop.f32.mrf.mxu0
    %v156 = vadd.f32 0.0, %v155
    %v157 = vpop.f32.mrf.mxu0
    %v158 = vpop.f32.mrf.mxu0
    %v159 = vadd.f32 0.0, %v158
    %v160 = vpop.f32.mrf.mxu0
    %161 = vmatprep.mubr.bf16.mxu0 0
    %162 = vmatmul.mubr.bf16.gmra.mxu0 %v87
    %v163 = vpop.f32.mrf.mxu0
    %v164 = vadd.f32 0.0, %v163
    %v165 = vpop.f32.mrf.mxu0
    %v166 = vpop.f32.mrf.mxu0
    %v167 = vadd.f32 0.0, %v166
    %v168 = vpop.f32.mrf.mxu0
    %169 = vmatprep.mubr.bf16.mxu0 0
    %170 = vmatmul.mubr.bf16.gmra.mxu0 %v90
    %v171 = vpop.f32.mrf.mxu0
    %v172 = vadd.f32 0.0, %v171
    %v173 = vpop.f32.mrf.mxu0
    %v174 = vpop.f32.mrf.mxu0
    %v175 = vadd.f32 0.0, %v174
    %v176 = vpop.f32.mrf.mxu0
    %177 = vmatprep.mubr.bf16.mxu0 0
    %178 = vmatmul.mubr.bf16.gmra.mxu0 %v93
    %v179 = vpop.f32.mrf.mxu0
    %v180 = vadd.f32 0.0, %v179
    %v181 = vpop.f32.mrf.mxu0
    %v182 = vpop.f32.mrf.mxu0
    %v183 = vadd.f32 0.0, %v182
    %v184 = vpop.f32.mrf.mxu0
    %185 = vmatprep.mubr.bf16.mxu0 0
    %186 = vmatmul.mubr.bf16.gmra.mxu0 %v96
    %v187 = vpop.f32.mrf.mxu0
    %v188 = vadd.f32 0.0, %v187
    %v189 = vpop.f32.mrf.mxu0
    %v190 = vpop.f32.mrf.mxu0
    %v191 = vadd.f32 0.0, %v190
    %v192 = vpop.f32.mrf.mxu0
    %193 = vmatprep.mubr.bf16.mxu0 0
    %194 = vmatmul.mubr.bf16.gmra.mxu0 %v99
    %v195 = vpop.f32.mrf.mxu0
    %v196 = vadd.f32 0.0, %v195
    %v197 = vpop.f32.mrf.mxu0
    %v198 = vpop.f32.mrf.mxu0
    %v199 = vadd.f32 0.0, %v198
    %v200 = vpop.f32.mrf.mxu0
    %201 = vdwg.mxu0
    %v202 = vpack.c.bf16 %v143, %v140
    %v203 = vpack.c.bf16 %v151, %v148
    %v204 = vpack.c.bf16 %v159, %v156
    %v205 = vpack.c.bf16 %v167, %v164
    %v206 = vpack.c.bf16 %v175, %v172
    %v207 = vpack.c.bf16 %v183, %v180
    %v208 = vpack.c.bf16 %v191, %v188
    %v209 = vpack.c.bf16 %v199, %v196
    %v218 = vunpack.c.l.b16 %v202
    %v219 = vunpack.c.h.b16 %v202
    %v220 = vunpack.c.l.b16 %v203
    %v221 = vunpack.c.h.b16 %v203
    %v222 = vunpack.c.l.b16 %v204
    %v223 = vunpack.c.h.b16 %v204
    %v224 = vunpack.c.l.b16 %v205
    %v225 = vunpack.c.h.b16 %v205
    %v226 = vunpack.c.l.b16 %v206
    %v227 = vunpack.c.h.b16 %v206
    %v228 = vunpack.c.l.b16 %v207
    %v229 = vunpack.c.h.b16 %v207
    %v230 = vunpack.c.l.b16 %v208
    %v231 = vunpack.c.h.b16 %v208
    %v232 = vunpack.c.l.b16 %v209
    %v233 = vunpack.c.h.b16 %v209
    %v234 = vpack.c.b16 %v218, %v218
    %v235 = vpack.c.b16 %v219, %v219
    %v236 = vpack.c.b16 %v220, %v220
    %v237 = vpack.c.b16 %v221, %v221
    %v238 = vpack.c.b16 %v222, %v222
    %v239 = vpack.c.b16 %v223, %v223
    %v240 = vpack.c.b16 %v224, %v224
    %v241 = vpack.c.b16 %v225, %v225
    %v242 = vpack.c.b16 %v226, %v226
    %v243 = vpack.c.b16 %v227, %v227
    %v244 = vpack.c.b16 %v228, %v228
    %v245 = vpack.c.b16 %v229, %v229
    %v246 = vpack.c.b16 %v230, %v230
    %v247 = vpack.c.b16 %v231, %v231
    %v248 = vpack.c.b16 %v232, %v232
    %v249 = vpack.c.b16 %v233, %v233
    %266 = vst [vmem:[#allocation2] sm:$0xf] %v234
    %267 = vst [vmem:[#allocation2 + $0x4] sm:$0xf] %v235
    %268 = vst [vmem:[#allocation2 + $0x8] sm:$0xf] %v236
    %269 = vst [vmem:[#allocation2 + $0xc] sm:$0xf] %v237
    %270 = vst [vmem:[#allocation2 + $0x10] sm:$0xf] %v238
    %271 = vst [vmem:[#allocation2 + $0x14] sm:$0xf] %v239
    %272 = vst [vmem:[#allocation2 + $0x18] sm:$0xf] %v240
    %273 = vst [vmem:[#allocation2 + $0x1c] sm:$0xf] %v241
    %274 = vst [vmem:[#allocation2 + $0x20] sm:$0xf] %v242
    %275 = vst [vmem:[#allocation2 + $0x24] sm:$0xf] %v243
    %276 = vst [vmem:[#allocation2 + $0x28] sm:$0xf] %v244
    %277 = vst [vmem:[#allocation2 + $0x2c] sm:$0xf] %v245
    %278 = vst [vmem:[#allocation2 + $0x30] sm:$0xf] %v246
    %279 = vst [vmem:[#allocation2 + $0x34] sm:$0xf] %v247
    %280 = vst [vmem:[#allocation2 + $0x38] sm:$0xf] %v248
    %281 = vst [vmem:[#allocation2 + $0x3c] sm:$0xf] %v249
    %v282 = vadd.f32 %v140, %v143
    %v283 = vadd.f32 %v282, %v148
    %v284 = vadd.f32 %v283, %v151
    %v285 = vadd.f32 %v284, %v156
    %v286 = vadd.f32 %v285, %v159
    %v287 = vadd.f32 %v286, %v164
    %v288 = vadd.f32 %v287, %v167
    %v289 = vadd.f32 %v288, %v172
    %v290 = vadd.f32 %v289, %v175
    %v291 = vadd.f32 %v290, %v180
    %v292 = vadd.f32 %v291, %v183
    %v293 = vadd.f32 %v292, %v188
    %v294 = vadd.f32 %v293, %v191
    %v295 = vadd.f32 %v294, %v196
    %v296 = vadd.f32 %v295, %v199
    %v297 = vrot.slane %v296, 4
    %v298 = vadd.f32 %v296, %v297
    %v299 = vrot.slane %v298, 2
    %v300 = vadd.f32 %v298, %v299
    %v301 = vrot.slane %v300, 1
    %v302 = vadd.f32 %v300, %v301
    %v303 = vmul.f32 %v140, %v140
    %v304 = vmul.f32 %v143, %v143
    %v305 = vmul.f32 %v148, %v148
    %v306 = vmul.f32 %v151, %v151
    %v307 = vmul.f32 %v156, %v156
    %v308 = vmul.f32 %v159, %v159
    %v309 = vmul.f32 %v164, %v164
    %v310 = vmul.f32 %v167, %v167
    %v311 = vmul.f32 %v172, %v172
    %v312 = vmul.f32 %v175, %v175
    %v313 = vmul.f32 %v180, %v180
    %v314 = vmul.f32 %v183, %v183
    %v315 = vmul.f32 %v188, %v188
    %v316 = vmul.f32 %v191, %v191
    %v317 = vmul.f32 %v196, %v196
    %v318 = vmul.f32 %v199, %v199
    %v319 = vadd.f32 %v303, %v304
    %v320 = vadd.f32 %v319, %v305
    %v321 = vadd.f32 %v320, %v306
    %v322 = vadd.f32 %v321, %v307
    %v323 = vadd.f32 %v322, %v308
    %v324 = vadd.f32 %v323, %v309
    %v325 = vadd.f32 %v324, %v310
    %v326 = vadd.f32 %v325, %v311
    %v327 = vadd.f32 %v326, %v312
    %v328 = vadd.f32 %v327, %v313
    %v329 = vadd.f32 %v328, %v314
    %v330 = vadd.f32 %v329, %v315
    %v331 = vadd.f32 %v330, %v316
    %v332 = vadd.f32 %v331, %v317
    %v333 = vadd.f32 %v332, %v318
    %v334 = vrot.slane %v333, 4
    %v335 = vadd.f32 %v333, %v334
    %v336 = vrot.slane %v335, 2
    %v337 = vadd.f32 %v335, %v336
    %v338 = vrot.slane %v337, 1
    %v339 = vadd.f32 %v337, %v338
    %vm340 = vcmask 1040384
    %v341 = vsel %vm340, %v302, %v339
    %342 = vst [vmem:[#allocation4] sm:$0x3] %v341
    // Predicated region
    $region14: #{tpu_custom_call.1} parent=1 // pred_check
      _
    $region15: #{tpu_custom_call.1} parent=1 // pred_check_branch
      %344 = sbr.rel (0) target = $region17
    $region16: #{tpu_custom_call.1} parent=1 // pred_region
      %s346 = ssub.s32 1024, 1024
      %347 = vsyncadd [#allocation3], %s346
      %s348 = sshll.u32 [#allocation2], 4
      %s349 = int_to_ptr.vmem [resolvable:$true] %s348
      %354 = dma.vmem_to_hbm [thread:$0]  %s349, 1024, %s3, [#allocation3], 64, 64, 4
    $region17: #{tpu_custom_call.1} parent=1 // pred_fallthru
      _
    // Predicated region
    $region18: #{tpu_custom_call.1} parent=1 // pred_check
      _
    $region19: #{tpu_custom_call.1} parent=1 // pred_check_branch
      %356 = sbr.rel (0) target = $region21
    $region20: #{tpu_custom_call.1} parent=1 // pred_region
      %s358 = ssub.s32 32, 32
      %359 = vsyncadd [#allocation5], %s358
      %s361 = sshll.u32 [#allocation4], 4
      %s362 = int_to_ptr.vmem [resolvable:$true] %s361
      %364 = dma.vmem_to_hbm [thread:$0]  %s362, 32, %s4, [#allocation5]
    $region21: #{tpu_custom_call.1} parent=1 // pred_fallthru
      _
    // Predicated region
    $region22: #{tpu_custom_call.1} parent=1 // pred_check
      _
    $region23: #{tpu_custom_call.1} parent=1 // pred_check_branch
      %366 = sbr.rel (0) target = $region25
    $region24: #{tpu_custom_call.1} parent=1 // pred_region
      %367 = dma.done [#allocation3], 1024
    $region25: #{tpu_custom_call.1} parent=1 // pred_fallthru
      _
    // Predicated region
    $region26: #{tpu_custom_call.1} parent=1 // pred_check
      _
    $region27: #{tpu_custom_call.1} parent=1 // pred_check_branch
      %369 = sbr.rel (0) target = $region29
    $region28: #{tpu_custom_call.1} parent=1 // pred_region
      %370 = dma.done [#allocation5], 32
    $region29: #{tpu_custom_call.1} parent=1 // pred_fallthru
      _
    %371 = vsyncpa [#allocation3], 1
    %372 = vsyncpa [#allocation5], 1

</llo_original>
